<compile_context>
chip_gen: v7x
topology: tpu7x:2x2x1
jax: 0.10.0
libtpu: 0.0.40
codegen_flags: <defaults>
</compile_context>

<pallas_src>
import functools
import math

import jax
import jax.numpy as jnp
from jax.experimental import pallas as pl
from jax.experimental.pallas import tpu as pltpu

_L_TILE_CAP = 16 * 1024          # lanes per grid step; keeps VMEM << 64 MiB (v7x)


def deepsets_kernel(x_ref,
                    w1_ref, t1_ref, w2_ref, t2_ref, w3_ref, t3_ref,
                    wr1_ref, tr1_ref, wr2_ref, br2_ref,
                    out_ref, acc_ref, *, seq_len, l_tile, mask_tail):
    l = pl.program_id(1)

    @pl.when(l == 0)
    def _():
        acc_ref[...] = jnp.zeros_like(acc_ref)

    # --- phi: three (Conv1d k=1 -> folded-BN shift -> ReLU) blocks, L on lanes.
    # x already arrives bf16 from HBM (wrapper cast); MXU accumulates in f32.
    x = x_ref[0]                                               # (Cin, L_TILE) bf16
    h = jnp.dot(w1_ref[...], x, preferred_element_type=jnp.float32)
    h = jnp.maximum(h + t1_ref[...], 0.0)                      # (H1, L_TILE) f32
    h = jnp.dot(w2_ref[...], h.astype(jnp.bfloat16),
                preferred_element_type=jnp.float32)
    h = jnp.maximum(h + t2_ref[...], 0.0)                      # (H2, L_TILE)
    h = jnp.dot(w3_ref[...], h.astype(jnp.bfloat16),
                preferred_element_type=jnp.float32)
    h = jnp.maximum(h + t3_ref[...], 0.0)                      # (H3, L_TILE)

    # Zero the contribution of padded (beyond true L) lane columns before the
    # pooled sum.  Only emitted when L was actually padded (static flag).
    if mask_tail:
        col = jax.lax.broadcasted_iota(jnp.int32, (1, l_tile), 1)
        h = jnp.where(col + l * l_tile < seq_len, h, 0.0)

    # --- partial sum of this L tile into the pooled-mean accumulator.
    acc_ref[...] += jnp.sum(h, axis=1, keepdims=True)          # (H3, 1)

    # --- last L tile: finish mean (divide by TRUE L), run rho, store result.
    @pl.when(l == pl.num_programs(1) - 1)
    def _():
        pooled = acc_ref[...] * (1.0 / float(seq_len))         # (H3, 1) f32
        r = jnp.dot(wr1_ref[...], pooled.astype(jnp.bfloat16),
                    preferred_element_type=jnp.float32)
        r = jnp.maximum(r + tr1_ref[...], 0.0)                 # (C1, 1)
        logit = jnp.dot(wr2_ref[...], r.astype(jnp.bfloat16),
                        preferred_element_type=jnp.float32) + br2_ref[...]
        out_ref[...] = jnp.broadcast_to(jax.nn.sigmoid(logit), out_ref.shape)


def _linear_init(key, fan_in, fan_out):
    """PyTorch-style uniform(-1/sqrt(fan_in), 1/sqrt(fan_in)); weight (out, in)."""
    bound = 1.0 / math.sqrt(fan_in)
    kw, kb = jax.random.split(key)
    w = jax.random.uniform(kw, (fan_out, fan_in), jnp.float32, -bound, bound)
    b = jax.random.uniform(kb, (fan_out,), jnp.float32, -bound, bound)
    return w, b


def _fold_bn(w, b, eps=1e-5):
    """Fold eval-mode BN (gamma=1, beta=0, running mean=0, var=1) plus the
    preceding layer's bias: BN(Wx + b) == (W*scale) x + (scale*b)."""
    n = w.shape[0]
    scale = 1.0 / jnp.sqrt(jnp.ones((n,), jnp.float32) + eps)
    w_folded = w * scale[:, None]
    t = (scale * b)[:, None]                  # (Cout, 1) column for lane bcast
    return w_folded, t


def init_params(key, inputs, hidden1, hidden2, hidden3, classify1):
    ks = jax.random.split(key, 5)
    w1, b1 = _linear_init(ks[0], inputs, hidden1)
    w2, b2 = _linear_init(ks[1], hidden1, hidden2)
    w3, b3 = _linear_init(ks[2], hidden2, hidden3)
    wr1, br1 = _linear_init(ks[3], hidden3, classify1)
    wr2, br2 = _linear_init(ks[4], classify1, 1)

    w1f, t1 = _fold_bn(w1, b1)
    w2f, t2 = _fold_bn(w2, b2)
    w3f, t3 = _fold_bn(w3, b3)
    wr1f, tr1 = _fold_bn(wr1, br1)

    return dict(
        # All matmul weights feed bf16 MXU matmuls (f32 accumulation);
        # additive shifts stay f32.
        w1=w1f.astype(jnp.bfloat16), t1=t1,
        w2=w2f.astype(jnp.bfloat16), t2=t2,
        w3=w3f.astype(jnp.bfloat16), t3=t3,
        wr1=wr1f.astype(jnp.bfloat16), tr1=tr1,
        wr2=wr2.astype(jnp.bfloat16), br2=br2[None, :],        # (1, 1)
    )


def _round_up(n, m):
    return ((n + m - 1) // m) * m


def _choose_tiling(length, cap=_L_TILE_CAP):
    """Pick (l_tile, padded_length, n_tiles): l_tile is a multiple of 128 and
    at most `cap`; padding per tile is kept below 128 lanes."""
    n_tiles = -(-length // cap)                       # ceil(L / cap)
    l_tile = _round_up(-(-length // n_tiles), 128)    # ceil(L / n) rounded to 128
    l_tile = min(l_tile, cap)
    return l_tile, n_tiles * l_tile, n_tiles


def deepsets_cnn_forward(x_ncl, params):
    """x_ncl: (B, C_in, L) float32 (PyTorch NCL). Returns (B, 1) float32."""
    B, c_in, L = x_ncl.shape
    # Halve HBM traffic: the kernel consumes bf16 anyway.
    x = x_ncl.astype(jnp.bfloat16)

    l_tile, l_pad, n_tiles = _choose_tiling(L)
    if l_pad != L:
        x = jnp.pad(x, ((0, 0), (0, 0), (0, l_pad - L)))
    grid = (B, n_tiles)

    weight_names = ("w1", "t1", "w2", "t2", "w3", "t3",
                    "wr1", "tr1", "wr2", "br2")
    weights = [params[k] for k in weight_names]
    h3 = params["w3"].shape[0]

    in_specs = [pl.BlockSpec((1, c_in, l_tile), lambda b, l: (b, 0, l))]
    # Small weights/shifts stay VMEM-resident (constant block index).
    in_specs += [pl.BlockSpec(w.shape, lambda b, l: (0, 0)) for w in weights]

    out = pl.pallas_call(
        functools.partial(deepsets_kernel, seq_len=L, l_tile=l_tile,
                          mask_tail=(l_pad != L)),
        out_shape=jax.ShapeDtypeStruct((B, 1, 128), jnp.float32),
        grid=grid,
        in_specs=in_specs,
        out_specs=pl.BlockSpec((1, 1, 128), lambda b, l: (b, 0, 0)),
        scratch_shapes=[pltpu.VMEM((h3, 1), jnp.float32)],
        compiler_params=pltpu.CompilerParams(
            # Batch axis "parallel" (megacore), L axis is the reduction
            # ("arbitrary") so the (H3,1) scratch is zeroed/finalized per row.
            dimension_semantics=("parallel", "arbitrary"),
            vmem_limit_bytes=32 * 1024 * 1024,
        ),
    )(x, *weights)
    return out[:, 0, :1]                       # (B, 1)


def deepsets_cnn_reference(x_ncl, params):
    """Pure-JAX reference with identical math (bf16 matmuls, f32 accum)."""
    x = x_ncl.astype(jnp.float32)

    def phi_block(h, w, t):
        y = jnp.einsum('oc,bcl->bol', w, h.astype(jnp.bfloat16),
                       preferred_element_type=jnp.float32)
        return jnp.maximum(y + t[None, :, :], 0.0)

    h = phi_block(x, params["w1"], params["t1"])
    h = phi_block(h, params["w2"], params["t2"])
    h = phi_block(h, params["w3"], params["t3"])
    pooled = jnp.mean(h, axis=-1)                              # (B, H3) f32
    r = jnp.einsum('ch,bh->bc', params["wr1"],
                   pooled.astype(jnp.bfloat16),
                   preferred_element_type=jnp.float32) + params["tr1"].T
    r = jnp.maximum(r, 0.0)
    logits = jnp.einsum('oc,bc->bo', params["wr2"],
                        r.astype(jnp.bfloat16),
                        preferred_element_type=jnp.float32) + params["br2"]
    return jax.nn.sigmoid(logits)                              # (B, 1)


if __name__ == "__main__":
    # Small shapes consistent with the module's forward: x is (B, inputs, max_len)
    B, INPUTS, MAX_LEN = 2, 4, 16
    H1, H2, H3, C1 = 32, 32, 32, 32

    key = jax.random.PRNGKey(0)
    k_x, k_p, k_x2 = jax.random.split(key, 3)
    params = init_params(k_p, INPUTS, H1, H2, H3, C1)

    # Case 1: short set (L < 128 -> padded to one full 128-lane tile + masked).
    x = jax.random.normal(k_x, (B, INPUTS, MAX_LEN), jnp.float32)
    out = jax.block_until_ready(deepsets_cnn_forward(x, params))
    ref = deepsets_cnn_reference(x, params)
    assert out.shape == (B, 1)
    assert bool(jnp.allclose(out, ref, atol=1e-3, rtol=1e-3)), "mismatch (L=16)"

    # Case 2: L not a multiple of 128 (exercises tail masking path).
    L2 = 200
    x2 = jax.random.normal(k_x2, (B, INPUTS, L2), jnp.float32)
    out2 = jax.block_until_ready(deepsets_cnn_forward(x2, params))
    ref2 = deepsets_cnn_reference(x2, params)
    assert out2.shape == (B, 1)
    assert bool(jnp.allclose(out2, ref2, atol=1e-3, rtol=1e-3)), "mismatch (L=200)"

    print("KERNEL_OK")
</pallas_src>

<mosaic_0001>
module attributes {stable_mosaic.version = 11 : i64} {
  func.func @deepsets_kernel(%arg0: i32, %arg1: i32, %arg2: memref<1x4x128xbf16, #tpu.memory_space<vmem>>, %arg3: memref<32x4xbf16, #tpu.memory_space<vmem>>, %arg4: memref<32x1xf32, #tpu.memory_space<vmem>>, %arg5: memref<32x32xbf16, #tpu.memory_space<vmem>>, %arg6: memref<32x1xf32, #tpu.memory_space<vmem>>, %arg7: memref<32x32xbf16, #tpu.memory_space<vmem>>, %arg8: memref<32x1xf32, #tpu.memory_space<vmem>>, %arg9: memref<32x32xbf16, #tpu.memory_space<vmem>>, %arg10: memref<32x1xf32, #tpu.memory_space<vmem>>, %arg11: memref<1x32xbf16, #tpu.memory_space<vmem>>, %arg12: memref<1x1xf32, #tpu.memory_space<vmem>>, %arg13: memref<1x1x128xf32, #tpu.memory_space<vmem>>, %arg14: memref<32x1xf32, #tpu.memory_space<vmem>>) attributes {dimension_semantics = [#tpu.dimension_semantics<parallel>, #tpu.dimension_semantics<arbitrary>], iteration_bounds = array<i64: 2, 1>, scalar_prefetch = 0 : i64, scratch_operands = 1 : i64, tpu.core_type = #tpu.core_type<tc>, window_params = [{transform_indices = @transform_0, window_bounds = array<i64: 1, 4, 128>}, {pipeline_mode = #tpu.pipeline_mode<synchronous>, transform_indices = @transform_1, window_bounds = array<i64: 32, 4>}, {pipeline_mode = #tpu.pipeline_mode<synchronous>, transform_indices = @transform_2, window_bounds = array<i64: 32, 1>}, {pipeline_mode = #tpu.pipeline_mode<synchronous>, transform_indices = @transform_3, window_bounds = array<i64: 32, 32>}, {pipeline_mode = #tpu.pipeline_mode<synchronous>, transform_indices = @transform_4, window_bounds = array<i64: 32, 1>}, {pipeline_mode = #tpu.pipeline_mode<synchronous>, transform_indices = @transform_5, window_bounds = array<i64: 32, 32>}, {pipeline_mode = #tpu.pipeline_mode<synchronous>, transform_indices = @transform_6, window_bounds = array<i64: 32, 1>}, {pipeline_mode = #tpu.pipeline_mode<synchronous>, transform_indices = @transform_7, window_bounds = array<i64: 32, 32>}, {pipeline_mode = #tpu.pipeline_mode<synchronous>, transform_indices = @transform_8, window_bounds = array<i64: 32, 1>}, {pipeline_mode = #tpu.pipeline_mode<synchronous>, transform_indices = @transform_9, window_bounds = array<i64: 1, 32>}, {pipeline_mode = #tpu.pipeline_mode<synchronous>, transform_indices = @transform_10, window_bounds = array<i64: 1, 1>}, {transform_indices = @transform_11, window_bounds = array<i64: 1, 1, 128>}]} {
    %c0_i32 = arith.constant 0 : i32
    %0 = arith.cmpi eq, %arg1, %c0_i32 : i32
    %1 = arith.extui %0 : i1 to i32
    %c0_i32_0 = arith.constant 0 : i32
    %2 = arith.cmpi ne, %1, %c0_i32_0 : i32
    scf.if %2 {
      %cst_28 = arith.constant 0.000000e+00 : f32
      %46 = vector.broadcast %cst_28 : f32 to vector<32x1xf32>
      %c0_29 = arith.constant 0 : index
      %c0_30 = arith.constant 0 : index
      %47 = vector.load %arg14[%c0_29, %c0_30] : memref<32x1xf32, #tpu.memory_space<vmem>>, vector<32x1xf32>
      tpu.vector_store %arg14[%c0_29, %c0_30], %46 {strides = array<i32>} : memref<32x1xf32, #tpu.memory_space<vmem>>, vector<32x1xf32>,
    } else {
    }
    %c0 = arith.constant 0 : index
    %c0_1 = arith.constant 0 : index
    %c0_2 = arith.constant 0 : index
    %3 = vector.load %arg2[%c0, %c0_1, %c0_2] : memref<1x4x128xbf16, #tpu.memory_space<vmem>>, vector<1x4x128xbf16>
    %4 = vector.shape_cast %3 : vector<1x4x128xbf16> to vector<4x128xbf16>
    %c0_3 = arith.constant 0 : index
    %c0_4 = arith.constant 0 : index
    %5 = vector.load %arg3[%c0_3, %c0_4] : memref<32x4xbf16, #tpu.memory_space<vmem>>, vector<32x4xbf16>
    %cst = arith.constant dense<0.000000e+00> : vector<32x128xf32>
    %6 = tpu.matmul %5, %4, %cst {dimension_numbers = #tpu.dot_dimension_numbers<[1], [0], [0], [1], [0, 0, 1, 1], [], []>} : vector<32x4xbf16>, vector<4x128xbf16>, vector<32x128xf32> -> vector<32x128xf32>
    %c0_5 = arith.constant 0 : index
    %c0_6 = arith.constant 0 : index
    %7 = vector.load %arg4[%c0_5, %c0_6] : memref<32x1xf32, #tpu.memory_space<vmem>>, vector<32x1xf32>
    %8 = vector.broadcast %7 : vector<32x1xf32> to vector<32x128xf32>
    %9 = arith.addf %6, %8 : vector<32x128xf32>
    %cst_7 = arith.constant 0.000000e+00 : f32
    %10 = vector.broadcast %cst_7 : f32 to vector<32x128xf32>
    %11 = arith.maximumf %9, %10 : vector<32x128xf32>
    %c0_8 = arith.constant 0 : index
    %c0_9 = arith.constant 0 : index
    %12 = vector.load %arg5[%c0_8, %c0_9] : memref<32x32xbf16, #tpu.memory_space<vmem>>, vector<32x32xbf16>
    %13 = arith.truncf %11 : vector<32x128xf32> to vector<32x128xbf16>
    %cst_10 = arith.constant dense<0.000000e+00> : vector<32x128xf32>
    %14 = tpu.matmul %12, %13, %cst_10 {dimension_numbers = #tpu.dot_dimension_numbers<[1], [0], [0], [1], [0, 0, 1, 1], [], []>} : vector<32x32xbf16>, vector<32x128xbf16>, vector<32x128xf32> -> vector<32x128xf32>
    %c0_11 = arith.constant 0 : index
    %c0_12 = arith.constant 0 : index
    %15 = vector.load %arg6[%c0_11, %c0_12] : memref<32x1xf32, #tpu.memory_space<vmem>>, vector<32x1xf32>
    %16 = vector.broadcast %15 : vector<32x1xf32> to vector<32x128xf32>
    %17 = arith.addf %14, %16 : vector<32x128xf32>
    %cst_13 = arith.constant 0.000000e+00 : f32
    %18 = vector.broadcast %cst_13 : f32 to vector<32x128xf32>
    %19 = arith.maximumf %17, %18 : vector<32x128xf32>
    %c0_14 = arith.constant 0 : index
    %c0_15 = arith.constant 0 : index
    %20 = vector.load %arg7[%c0_14, %c0_15] : memref<32x32xbf16, #tpu.memory_space<vmem>>, vector<32x32xbf16>
    %21 = arith.truncf %19 : vector<32x128xf32> to vector<32x128xbf16>
    %cst_16 = arith.constant dense<0.000000e+00> : vector<32x128xf32>
    %22 = tpu.matmul %20, %21, %cst_16 {dimension_numbers = #tpu.dot_dimension_numbers<[1], [0], [0], [1], [0, 0, 1, 1], [], []>} : vector<32x32xbf16>, vector<32x128xbf16>, vector<32x128xf32> -> vector<32x128xf32>
    %c0_17 = arith.constant 0 : index
    %c0_18 = arith.constant 0 : index
    %23 = vector.load %arg8[%c0_17, %c0_18] : memref<32x1xf32, #tpu.memory_space<vmem>>, vector<32x1xf32>
    %24 = vector.broadcast %23 : vector<32x1xf32> to vector<32x128xf32>
    %25 = arith.addf %22, %24 : vector<32x128xf32>
    %cst_19 = arith.constant 0.000000e+00 : f32
    %26 = vector.broadcast %cst_19 : f32 to vector<32x128xf32>
    %27 = arith.maximumf %25, %26 : vector<32x128xf32>
    %28 = tpu.iota {dimensions = array<i32: 1>} : vector<1x128xi32>
    %c128_i32 = arith.constant 128 : i32
    %29 = arith.muli %arg1, %c128_i32 : i32
    %30 = vector.broadcast %29 : i32 to vector<1x128xi32>
    %31 = arith.addi %28, %30 : vector<1x128xi32>
    %c16_i32 = arith.constant 16 : i32
    %32 = vector.broadcast %c16_i32 : i32 to vector<1x128xi32>
    %33 = arith.cmpi slt, %31, %32 : vector<1x128xi32>
    %cst_20 = arith.constant 0.000000e+00 : f32
    %34 = vector.shape_cast %33 : vector<1x128xi1> to vector<1x128xi1>
    %35 = vector.broadcast %34 : vector<1x128xi1> to vector<32x128xi1>
    %36 = vector.broadcast %cst_20 : f32 to vector<32x128xf32>
    %37 = arith.select %35, %27, %36 : vector<32x128xi1>, vector<32x128xf32>
    %c0_21 = arith.constant 0 : index
    %c0_22 = arith.constant 0 : index
    %38 = vector.load %arg14[%c0_21, %c0_22] : memref<32x1xf32, #tpu.memory_space<vmem>>, vector<32x1xf32>
    %cst_23 = arith.constant dense<0.000000e+00> : vector<32xf32>
    %39 = vector.multi_reduction <add>, %37, %cst_23 [1] : vector<32x128xf32> to vector<32xf32>
    %40 = vector.shape_cast %39 : vector<32xf32> to vector<32x1xf32>
    %41 = arith.addf %38, %40 : vector<32x1xf32>
    %c0_24 = arith.constant 0 : index
    %c0_25 = arith.constant 0 : index
    %42 = vector.load %arg14[%c0_24, %c0_25] : memref<32x1xf32, #tpu.memory_space<vmem>>, vector<32x1xf32>
    tpu.vector_store %arg14[%c0_24, %c0_25], %41 {strides = array<i32>} : memref<32x1xf32, #tpu.memory_space<vmem>>, vector<32x1xf32>,
    %c0_i32_26 = arith.constant 0 : i32
    %43 = arith.cmpi eq, %arg1, %c0_i32_26 : i32
    %44 = arith.extui %43 : i1 to i32
    %c0_i32_27 = arith.constant 0 : i32
    %45 = arith.cmpi ne, %44, %c0_i32_27 : i32
    scf.if %45 {
      %c0_28 = arith.constant 0 : index
      %c0_29 = arith.constant 0 : index
      %46 = vector.load %arg14[%c0_28, %c0_29] : memref<32x1xf32, #tpu.memory_space<vmem>>, vector<32x1xf32>
      %cst_30 = arith.constant 6.250000e-02 : f32
      %47 = vector.broadcast %cst_30 : f32 to vector<32x1xf32>
      %48 = arith.mulf %46, %47 : vector<32x1xf32>
      %c0_31 = arith.constant 0 : index
      %c0_32 = arith.constant 0 : index
      %49 = vector.load %arg9[%c0_31, %c0_32] : memref<32x32xbf16, #tpu.memory_space<vmem>>, vector<32x32xbf16>
      %50 = arith.truncf %48 : vector<32x1xf32> to vector<32x1xbf16>
      %cst_33 = arith.constant dense<0.000000e+00> : vector<32x1xf32>
      %51 = tpu.matmul %49, %50, %cst_33 {dimension_numbers = #tpu.dot_dimension_numbers<[1], [0], [0], [1], [0, 0, 1, 1], [], []>} : vector<32x32xbf16>, vector<32x1xbf16>, vector<32x1xf32> -> vector<32x1xf32>
      %c0_34 = arith.constant 0 : index
      %c0_35 = arith.constant 0 : index
      %52 = vector.load %arg10[%c0_34, %c0_35] : memref<32x1xf32, #tpu.memory_space<vmem>>, vector<32x1xf32>
      %53 = arith.addf %51, %52 : vector<32x1xf32>
      %cst_36 = arith.constant 0.000000e+00 : f32
      %54 = vector.broadcast %cst_36 : f32 to vector<32x1xf32>
      %55 = arith.maximumf %53, %54 : vector<32x1xf32>
      %c0_37 = arith.constant 0 : index
      %c0_38 = arith.constant 0 : index
      %56 = vector.load %arg11[%c0_37, %c0_38] : memref<1x32xbf16, #tpu.memory_space<vmem>>, vector<1x32xbf16>
      %57 = arith.truncf %55 : vector<32x1xf32> to vector<32x1xbf16>
      %cst_39 = arith.constant dense<0.000000e+00> : vector<1x1xf32>
      %58 = tpu.matmul %56, %57, %cst_39 {dimension_numbers = #tpu.dot_dimension_numbers<[1], [0], [0], [1], [0, 0, 1, 1], [], []>} : vector<1x32xbf16>, vector<32x1xbf16>, vector<1x1xf32> -> vector<1x1xf32>
      %c0_40 = arith.constant 0 : index
      %c0_41 = arith.constant 0 : index
      %59 = vector.load %arg12[%c0_40, %c0_41] : memref<1x1xf32, #tpu.memory_space<vmem>>, vector<1x1xf32>
      %60 = arith.addf %58, %59 : vector<1x1xf32>
      %61 = arith.negf %60 : vector<1x1xf32>
      %62 = math.exp %61 : vector<1x1xf32>
      %cst_42 = arith.constant 1.000000e+00 : f32
      %63 = vector.broadcast %cst_42 : f32 to vector<1x1xf32>
      %64 = arith.addf %63, %62 : vector<1x1xf32>
      %65 = arith.divf %63, %64 : vector<1x1xf32>
      %66 = vector.shape_cast %65 : vector<1x1xf32> to vector<1x1x1xf32>
      %67 = vector.broadcast %66 : vector<1x1x1xf32> to vector<1x1x128xf32>
      %c0_43 = arith.constant 0 : index
      %c0_44 = arith.constant 0 : index
      %c0_45 = arith.constant 0 : index
      %68 = vector.load %arg13[%c0_43, %c0_44, %c0_45] : memref<1x1x128xf32, #tpu.memory_space<vmem>>, vector<1x1x128xf32>
      tpu.vector_store %arg13[%c0_43, %c0_44, %c0_45], %67 {strides = array<i32>} : memref<1x1x128xf32, #tpu.memory_space<vmem>>, vector<1x1x128xf32>,
    } else {
    }
    return
  }
  func.func @transform_0(%arg0: i32, %arg1: i32) -> (i32, i32, i32) {
    %c0_i32 = arith.constant 0 : i32
    %c0_i32_0 = arith.constant 0 : i32
    return %arg0, %c0_i32, %arg1 : i32, i32, i32
  }
  func.func @transform_1(%arg0: i32, %arg1: i32) -> (i32, i32) {
    %c0_i32 = arith.constant 0 : i32
    %c0_i32_0 = arith.constant 0 : i32
    %c0_i32_1 = arith.constant 0 : i32
    return %c0_i32, %c0_i32_0 : i32, i32
  }
  func.func @transform_2(%arg0: i32, %arg1: i32) -> (i32, i32) {
    %c0_i32 = arith.constant 0 : i32
    %c0_i32_0 = arith.constant 0 : i32
    %c0_i32_1 = arith.constant 0 : i32
    return %c0_i32, %c0_i32_0 : i32, i32
  }
  func.func @transform_3(%arg0: i32, %arg1: i32) -> (i32, i32) {
    %c0_i32 = arith.constant 0 : i32
    %c0_i32_0 = arith.constant 0 : i32
    %c0_i32_1 = arith.constant 0 : i32
    return %c0_i32, %c0_i32_0 : i32, i32
  }
  func.func @transform_4(%arg0: i32, %arg1: i32) -> (i32, i32) {
    %c0_i32 = arith.constant 0 : i32
    %c0_i32_0 = arith.constant 0 : i32
    %c0_i32_1 = arith.constant 0 : i32
    return %c0_i32, %c0_i32_0 : i32, i32
  }
  func.func @transform_5(%arg0: i32, %arg1: i32) -> (i32, i32) {
    %c0_i32 = arith.constant 0 : i32
    %c0_i32_0 = arith.constant 0 : i32
    %c0_i32_1 = arith.constant 0 : i32
    return %c0_i32, %c0_i32_0 : i32, i32
  }
  func.func @transform_6(%arg0: i32, %arg1: i32) -> (i32, i32) {
    %c0_i32 = arith.constant 0 : i32
    %c0_i32_0 = arith.constant 0 : i32
    %c0_i32_1 = arith.constant 0 : i32
    return %c0_i32, %c0_i32_0 : i32, i32
  }
  func.func @transform_7(%arg0: i32, %arg1: i32) -> (i32, i32) {
    %c0_i32 = arith.constant 0 : i32
    %c0_i32_0 = arith.constant 0 : i32
    %c0_i32_1 = arith.constant 0 : i32
    return %c0_i32, %c0_i32_0 : i32, i32
  }
  func.func @transform_8(%arg0: i32, %arg1: i32) -> (i32, i32) {
    %c0_i32 = arith.constant 0 : i32
    %c0_i32_0 = arith.constant 0 : i32
    %c0_i32_1 = arith.constant 0 : i32
    return %c0_i32, %c0_i32_0 : i32, i32
  }
  func.func @transform_9(%arg0: i32, %arg1: i32) -> (i32, i32) {
    %c0_i32 = arith.constant 0 : i32
    %c0_i32_0 = arith.constant 0 : i32
    %c0_i32_1 = arith.constant 0 : i32
    return %c0_i32, %c0_i32_0 : i32, i32
  }
  func.func @transform_10(%arg0: i32, %arg1: i32) -> (i32, i32) {
    %c0_i32 = arith.constant 0 : i32
    %c0_i32_0 = arith.constant 0 : i32
    %c0_i32_1 = arith.constant 0 : i32
    return %c0_i32, %c0_i32_0 : i32, i32
  }
  func.func @transform_11(%arg0: i32, %arg1: i32) -> (i32, i32, i32) {
    %c0_i32 = arith.constant 0 : i32
    %c0_i32_0 = arith.constant 0 : i32
    %c0_i32_1 = arith.constant 0 : i32
    return %arg0, %c0_i32, %c0_i32_0 : i32, i32, i32
  }
}

</mosaic_0001>

<llo_original>
// kernel: tpu_custom_call.1
$region0: #{tpu_custom_call.1}
  #allocation0 [shape = 'u32[]', space=smem, size = 0x4, offset = 0x4, fixed_abs, tag = 'smem constant byte address 0x4 - core index']
  #allocation1 [shape = 'u32[144,128]{1,0:T(1,128)}', space=vmem, size = 0x12000, scoped, tag = 'internal scratch']
  #allocation2 [shape = 'f32[32,1]{1,0:T(8,128)}', space=vmem, size = 0x4000, scoped, tag = 'scratch operand']
  #allocation3 [shape = 'f32[1,1]{1,0:T(1,128)S(1)}', space=vmem, size = 0x200, scoped, tag = 'scoped memory for tpu_custom_call.1']
  %s0 = inlined_call_operand.vmem [shape: bf16[2,4,128], index: 0, kind: input, shape index: {}]
  %s1 = inlined_call_operand.vmem [shape: bf16[32,4], index: 1, kind: input, shape index: {}]
  %s2 = inlined_call_operand.vmem [shape: f32[32,1], index: 2, kind: input, shape index: {}]
  %s3 = inlined_call_operand.vmem [shape: bf16[32,32], index: 3, kind: input, shape index: {}]
  %s4 = inlined_call_operand.vmem [shape: f32[32,1], index: 4, kind: input, shape index: {}]
  %s5 = inlined_call_operand.vmem [shape: bf16[32,32], index: 5, kind: input, shape index: {}]
  %s6 = inlined_call_operand.vmem [shape: f32[32,1], index: 6, kind: input, shape index: {}]
  %s7 = inlined_call_operand.vmem [shape: bf16[32,32], index: 7, kind: input, shape index: {}]
  %s8 = inlined_call_operand.vmem [shape: f32[32,1], index: 8, kind: input, shape index: {}]
  %s9 = inlined_call_operand.vmem [shape: bf16[1,32], index: 9, kind: input, shape index: {}]
  %s10 = inlined_call_operand.<no memory space> [shape: f32[1,1], index: 10, kind: input, shape index: {}]
  %s11 = inlined_call_operand.hbm [shape: f32[2,1,128], index: 11, kind: output, shape index: {}]
  %s12 = sld [smem:[#allocation0]]
  $region85: #{tpu_custom_call.1} parent=0
    _
  %s14 = ssub.s32 1, %s12
  %s15 = scalar_select 0, %s14, %s12
  %v16 = vstv %s10
  %17 = vst [vmem:[#allocation3] sm:$0x1] %v16
  $region1: #{tpu_custom_call.1} parent=0
    #allocation4 [shape = 'u8[1024]{0}', space=vmem, size = 0x400, scoped, tag = 'output window, operand 0']
    #allocation5 [shape = 's32[2]{0}', space=sflag, size = 0x8, scoped, tag = 'scoped memory for tpu_custom_call.1']
    %18 = vsyncpa [#allocation5], 0
    %s19 = scalar_lea.sflag [#allocation5], 1
    %20 = vsyncpa %s19, 0
    loop: start=0, step=1, limit=4
    $region2: #{tpu_custom_call.1} parent=1 // loop_pre_header
      _
    $region3: #{tpu_custom_call.1} parent=1 // loop_header
      %s22 = sphi 0, %s26
      %p23 = scmp.ge.s32.totalorder %s22, 4
      %s29 = sphi 0, %s41
      %s30 = sphi 0, %s37
      %s31 = sphi 0, %s29
      %s32 = sphi 0, %s30
      %s33 = sphi 0, %s31
      %s34 = sphi 0, %s32
      %s46 = sphi 0, %s48
      %s49 = sphi 0, %s46
      %s50 = sphi 0, %s49
      %s66 = sphi 0, %s50
      %s70 = sphi 0, %s70
      %s72 = sphi 0, %s70
      %s73 = sphi 0, %s72
      %s87 = sphi 0, %s73
      %s91 = sphi 0, %s91
      %s93 = sphi 0, %s91
      %s94 = sphi 0, %s93
      %s108 = sphi 0, %s94
      %s112 = sphi 0, %s112
      %s114 = sphi 0, %s112
      %s115 = sphi 0, %s114
      %s129 = sphi 0, %s115
      %s133 = sphi 0, %s133
      %s135 = sphi 0, %s133
      %s136 = sphi 0, %s135
      %s150 = sphi 0, %s136
      %s154 = sphi 0, %s154
      %s156 = sphi 0, %s154
      %s157 = sphi 0, %s156
      %s171 = sphi 0, %s157
      %s175 = sphi 0, %s175
      %s177 = sphi 0, %s175
      %s178 = sphi 0, %s177
      %s192 = sphi 0, %s178
      %s196 = sphi 0, %s196
      %s198 = sphi 0, %s196
      %s199 = sphi 0, %s198
      %s213 = sphi 0, %s199
      %s217 = sphi 0, %s217
      %s219 = sphi 0, %s217
      %s220 = sphi 0, %s219
      %s234 = sphi 0, %s220
      %s238 = sphi 0, %s238
      %s240 = sphi 0, %s238
      %s241 = sphi 0, %s240
      %s255 = sphi 0, %s241
      %s259 = sphi 0, %s259
      %s261 = sphi 0, %s259
      %s262 = sphi 0, %s261
      %s276 = sphi 0, %s262
      %s282 = sphi 0, %s284
      %s285 = sphi 0, %s282
      %s286 = sphi 0, %s285
      %s302 = sphi 0, %s286
    $region4: #{tpu_custom_call.1} parent=1 // loop_header_branch
      %25 = sbr.rel (%p23) target = $region8
    $region5: #{tpu_custom_call.1} parent=1 // loop_body
      %s27 = ssub.s32 %s22, 1
      %s28 = ssub.s32 %s22, 2
      %s35 = sadd.s32 1, %s30
      %p36 = scmp.ge.s32.totalorder %s35, 1
      %s37 = scalar_select %p36, 0, %s35
      %s38 = sadd.s32 1, %s29
      %s39 = scalar_select %p36, %s38, %s29
      %p40 = scmp.ge.s32.totalorder %s39, 2
      %s41 = scalar_select %p40, 0, %s39
      %s42 = ssub.s32 %s29, %s41
      %s43 = ssub.s32 %s30, %s37
      %s44 = sor.u32 %s42, %s43
      %p45 = scmp.eq.s32.totalorder %s44, 0
      %s47 = sadd.s32 %s46, 1
      %s48 = scalar_select %p45, %s46, %s47
      %p51 = pneg %p45
      %p52 = scmp.eq.s32.totalorder %s22, 1
      %p53 = por %p51, %p52
      %p54 = scmp.ne.s32.totalorder %s46, %s49
      %p55 = scmp.eq.s32.totalorder %s22, 0
      %p56 = por %p54, %p55
      %p57 = scmp.ne.s32.totalorder %s46, %s49
      %p58 = scmp.eq.s32.totalorder %s27, 1
      %p59 = por %p57, %p58
      %p60 = scmp.ne.s32.totalorder %s49, %s50
      %p61 = scmp.eq.s32.totalorder %s27, 0
      %p62 = por %p60, %p61
      %p63 = scmp.ne.s32.totalorder %s49, %s50
      %p64 = scmp.eq.s32.totalorder %s28, 1
      %p65 = por %p63, %p64
      %p67 = scmp.ne.s32.totalorder %s50, %s66
      %p68 = scmp.eq.s32.totalorder %s28, 0
      %p69 = por %p67, %p68
      %s71 = sadd.s32 %s70, 1
      %p74 = scmp.eq.s32.totalorder %s22, 1
      %p75 = scmp.ne.s32.totalorder %s70, %s72
      %p76 = scmp.eq.s32.totalorder %s22, 0
      %p77 = por %p75, %p76
      %p78 = scmp.ne.s32.totalorder %s70, %s72
      %p79 = scmp.eq.s32.totalorder %s27, 1
      %p80 = por %p78, %p79
      %p81 = scmp.ne.s32.totalorder %s72, %s73
      %p82 = scmp.eq.s32.totalorder %s27, 0
      %p83 = por %p81, %p82
      %p84 = scmp.ne.s32.totalorder %s72, %s73
      %p85 = scmp.eq.s32.totalorder %s28, 1
      %p86 = por %p84, %p85
      %p88 = scmp.ne.s32.totalorder %s73, %s87
      %p89 = scmp.eq.s32.totalorder %s28, 0
      %p90 = por %p88, %p89
      %s92 = sadd.s32 %s91, 1
      %p95 = scmp.eq.s32.totalorder %s22, 1
      %p96 = scmp.ne.s32.totalorder %s91, %s93
      %p97 = scmp.eq.s32.totalorder %s22, 0
      %p98 = por %p96, %p97
      %p99 = scmp.ne.s32.totalorder %s91, %s93
      %p100 = scmp.eq.s32.totalorder %s27, 1
      %p101 = por %p99, %p100
      %p102 = scmp.ne.s32.totalorder %s93, %s94
      %p103 = scmp.eq.s32.totalorder %s27, 0
      %p104 = por %p102, %p103
      %p105 = scmp.ne.s32.totalorder %s93, %s94
      %p106 = scmp.eq.s32.totalorder %s28, 1
      %p107 = por %p105, %p106
      %p109 = scmp.ne.s32.totalorder %s94, %s108
      %p110 = scmp.eq.s32.totalorder %s28, 0
      %p111 = por %p109, %p110
      %s113 = sadd.s32 %s112, 1
      %p116 = scmp.eq.s32.totalorder %s22, 1
      %p117 = scmp.ne.s32.totalorder %s112, %s114
      %p118 = scmp.eq.s32.totalorder %s22, 0
      %p119 = por %p117, %p118
      %p120 = scmp.ne.s32.totalorder %s112, %s114
      %p121 = scmp.eq.s32.totalorder %s27, 1
      %p122 = por %p120, %p121
      %p123 = scmp.ne.s32.totalorder %s114, %s115
      %p124 = scmp.eq.s32.totalorder %s27, 0
      %p125 = por %p123, %p124
      %p126 = scmp.ne.s32.totalorder %s114, %s115
      %p127 = scmp.eq.s32.totalorder %s28, 1
      %p128 = por %p126, %p127
      %p130 = scmp.ne.s32.totalorder %s115, %s129
      %p131 = scmp.eq.s32.totalorder %s28, 0
      %p132 = por %p130, %p131
      %s134 = sadd.s32 %s133, 1
      %p137 = scmp.eq.s32.totalorder %s22, 1
      %p138 = scmp.ne.s32.totalorder %s133, %s135
      %p139 = scmp.eq.s32.totalorder %s22, 0
      %p140 = por %p138, %p139
      %p141 = scmp.ne.s32.totalorder %s133, %s135
      %p142 = scmp.eq.s32.totalorder %s27, 1
      %p143 = por %p141, %p142
      %p144 = scmp.ne.s32.totalorder %s135, %s136
      %p145 = scmp.eq.s32.totalorder %s27, 0
      %p146 = por %p144, %p145
      %p147 = scmp.ne.s32.totalorder %s135, %s136
      %p148 = scmp.eq.s32.totalorder %s28, 1
      %p149 = por %p147, %p148
      %p151 = scmp.ne.s32.totalorder %s136, %s150
      %p152 = scmp.eq.s32.totalorder %s28, 0
      %p153 = por %p151, %p152
      %s155 = sadd.s32 %s154, 1
      %p158 = scmp.eq.s32.totalorder %s22, 1
      %p159 = scmp.ne.s32.totalorder %s154, %s156
      %p160 = scmp.eq.s32.totalorder %s22, 0
      %p161 = por %p159, %p160
      %p162 = scmp.ne.s32.totalorder %s154, %s156
      %p163 = scmp.eq.s32.totalorder %s27, 1
      %p164 = por %p162, %p163
      %p165 = scmp.ne.s32.totalorder %s156, %s157
      %p166 = scmp.eq.s32.totalorder %s27, 0
      %p167 = por %p165, %p166
      %p168 = scmp.ne.s32.totalorder %s156, %s157
      %p169 = scmp.eq.s32.totalorder %s28, 1
      %p170 = por %p168, %p169
      %p172 = scmp.ne.s32.totalorder %s157, %s171
      %p173 = scmp.eq.s32.totalorder %s28, 0
      %p174 = por %p172, %p173
      %s176 = sadd.s32 %s175, 1
      %p179 = scmp.eq.s32.totalorder %s22, 1
      %p180 = scmp.ne.s32.totalorder %s175, %s177
      %p181 = scmp.eq.s32.totalorder %s22, 0
      %p182 = por %p180, %p181
      %p183 = scmp.ne.s32.totalorder %s175, %s177
      %p184 = scmp.eq.s32.totalorder %s27, 1
      %p185 = por %p183, %p184
      %p186 = scmp.ne.s32.totalorder %s177, %s178
      %p187 = scmp.eq.s32.totalorder %s27, 0
      %p188 = por %p186, %p187
      %p189 = scmp.ne.s32.totalorder %s177, %s178
      %p190 = scmp.eq.s32.totalorder %s28, 1
      %p191 = por %p189, %p190
      %p193 = scmp.ne.s32.totalorder %s178, %s192
      %p194 = scmp.eq.s32.totalorder %s28, 0
      %p195 = por %p193, %p194
      %s197 = sadd.s32 %s196, 1
      %p200 = scmp.eq.s32.totalorder %s22, 1
      %p201 = scmp.ne.s32.totalorder %s196, %s198
      %p202 = scmp.eq.s32.totalorder %s22, 0
      %p203 = por %p201, %p202
      %p204 = scmp.ne.s32.totalorder %s196, %s198
      %p205 = scmp.eq.s32.totalorder %s27, 1
      %p206 = por %p204, %p205
      %p207 = scmp.ne.s32.totalorder %s198, %s199
      %p208 = scmp.eq.s32.totalorder %s27, 0
      %p209 = por %p207, %p208
      %p210 = scmp.ne.s32.totalorder %s198, %s199
      %p211 = scmp.eq.s32.totalorder %s28, 1
      %p212 = por %p210, %p211
      %p214 = scmp.ne.s32.totalorder %s199, %s213
      %p215 = scmp.eq.s32.totalorder %s28, 0
      %p216 = por %p214, %p215
      %s218 = sadd.s32 %s217, 1
      %p221 = scmp.eq.s32.totalorder %s22, 1
      %p222 = scmp.ne.s32.totalorder %s217, %s219
      %p223 = scmp.eq.s32.totalorder %s22, 0
      %p224 = por %p222, %p223
      %p225 = scmp.ne.s32.totalorder %s217, %s219
      %p226 = scmp.eq.s32.totalorder %s27, 1
      %p227 = por %p225, %p226
      %p228 = scmp.ne.s32.totalorder %s219, %s220
      %p229 = scmp.eq.s32.totalorder %s27, 0
      %p230 = por %p228, %p229
      %p231 = scmp.ne.s32.totalorder %s219, %s220
      %p232 = scmp.eq.s32.totalorder %s28, 1
      %p233 = por %p231, %p232
      %p235 = scmp.ne.s32.totalorder %s220, %s234
      %p236 = scmp.eq.s32.totalorder %s28, 0
      %p237 = por %p235, %p236
      %s239 = sadd.s32 %s238, 1
      %p242 = scmp.eq.s32.totalorder %s22, 1
      %p243 = scmp.ne.s32.totalorder %s238, %s240
      %p244 = scmp.eq.s32.totalorder %s22, 0
      %p245 = por %p243, %p244
      %p246 = scmp.ne.s32.totalorder %s238, %s240
      %p247 = scmp.eq.s32.totalorder %s27, 1
      %p248 = por %p246, %p247
      %p249 = scmp.ne.s32.totalorder %s240, %s241
      %p250 = scmp.eq.s32.totalorder %s27, 0
      %p251 = por %p249, %p250
      %p252 = scmp.ne.s32.totalorder %s240, %s241
      %p253 = scmp.eq.s32.totalorder %s28, 1
      %p254 = por %p252, %p253
      %p256 = scmp.ne.s32.totalorder %s241, %s255
      %p257 = scmp.eq.s32.totalorder %s28, 0
      %p258 = por %p256, %p257
      %s260 = sadd.s32 %s259, 1
      %p263 = scmp.eq.s32.totalorder %s22, 1
      %p264 = scmp.ne.s32.totalorder %s259, %s261
      %p265 = scmp.eq.s32.totalorder %s22, 0
      %p266 = por %p264, %p265
      %p267 = scmp.ne.s32.totalorder %s259, %s261
      %p268 = scmp.eq.s32.totalorder %s27, 1
      %p269 = por %p267, %p268
      %p270 = scmp.ne.s32.totalorder %s261, %s262
      %p271 = scmp.eq.s32.totalorder %s27, 0
      %p272 = por %p270, %p271
      %p273 = scmp.ne.s32.totalorder %s261, %s262
      %p274 = scmp.eq.s32.totalorder %s28, 1
      %p275 = por %p273, %p274
      %p277 = scmp.ne.s32.totalorder %s262, %s276
      %p278 = scmp.eq.s32.totalorder %s28, 0
      %p279 = por %p277, %p278
      %s280 = ssub.s32 %s29, %s41
      %p281 = scmp.eq.s32.totalorder %s280, 0
      %s283 = sadd.s32 %s282, 1
      %s284 = scalar_select %p281, %s282, %s283
      %p287 = pneg %p281
      %p288 = scmp.eq.s32.totalorder %s22, 1
      %p289 = por %p287, %p288
      %p290 = scmp.ne.s32.totalorder %s282, %s285
      %p291 = scmp.eq.s32.totalorder %s22, 0
      %p292 = por %p290, %p291
      %p293 = scmp.ne.s32.totalorder %s282, %s285
      %p294 = scmp.eq.s32.totalorder %s27, 1
      %p295 = por %p293, %p294
      %p296 = scmp.ne.s32.totalorder %s285, %s286
      %p297 = scmp.eq.s32.totalorder %s27, 0
      %p298 = por %p296, %p297
      %p299 = scmp.ne.s32.totalorder %s285, %s286
      %p300 = scmp.eq.s32.totalorder %s28, 1
      %p301 = por %p299, %p300
      %p303 = scmp.ne.s32.totalorder %s286, %s302
      %p304 = scmp.eq.s32.totalorder %s28, 0
      %p305 = por %p303, %p304
      %p306 = scmp.le.s32.totalorder 1, %s22
      %p307 = scmp.lt.s32.totalorder %s22, 3
      %p308 = pnand %p306, %p307
      %p309 = pneg %p308
      // Predicated region
      $region9: #{tpu_custom_call.1} parent=5 // pred_check
        _
      $region10: #{tpu_custom_call.1} parent=5 // pred_check_branch
        %311 = sbr.rel (%p308) target = $region12
      $region11: #{tpu_custom_call.1} parent=5 // pred_region
        %s312 = ssub.s32 %s22, 1
        // Predicated region
        $region13: #{tpu_custom_call.1} parent=11 // pred_check
          %p313 = pneg %p83
        $region14: #{tpu_custom_call.1} parent=11 // pred_check_branch
          %315 = sbr.rel (%p313) target = $region16
        $region15: #{tpu_custom_call.1} parent=11 // pred_region
          _
        $region16: #{tpu_custom_call.1} parent=11 // pred_fallthru
          _
        // Predicated region
        $region17: #{tpu_custom_call.1} parent=11 // pred_check
          %p316 = pneg %p104
        $region18: #{tpu_custom_call.1} parent=11 // pred_check_branch
          %318 = sbr.rel (%p316) target = $region20
        $region19: #{tpu_custom_call.1} parent=11 // pred_region
          _
        $region20: #{tpu_custom_call.1} parent=11 // pred_fallthru
          _
        // Predicated region
        $region21: #{tpu_custom_call.1} parent=11 // pred_check
          %p319 = pneg %p125
        $region22: #{tpu_custom_call.1} parent=11 // pred_check_branch
          %321 = sbr.rel (%p319) target = $region24
        $region23: #{tpu_custom_call.1} parent=11 // pred_region
          _
        $region24: #{tpu_custom_call.1} parent=11 // pred_fallthru
          _
        // Predicated region
        $region25: #{tpu_custom_call.1} parent=11 // pred_check
          %p322 = pneg %p146
        $region26: #{tpu_custom_call.1} parent=11 // pred_check_branch
          %324 = sbr.rel (%p322) target = $region28
        $region27: #{tpu_custom_call.1} parent=11 // pred_region
          _
        $region28: #{tpu_custom_call.1} parent=11 // pred_fallthru
          _
        // Predicated region
        $region29: #{tpu_custom_call.1} parent=11 // pred_check
          %p325 = pneg %p167
        $region30: #{tpu_custom_call.1} parent=11 // pred_check_branch
          %327 = sbr.rel (%p325) target = $region32
        $region31: #{tpu_custom_call.1} parent=11 // pred_region
          _
        $region32: #{tpu_custom_call.1} parent=11 // pred_fallthru
          _
        // Predicated region
        $region33: #{tpu_custom_call.1} parent=11 // pred_check
          %p328 = pneg %p188
        $region34: #{tpu_custom_call.1} parent=11 // pred_check_branch
          %330 = sbr.rel (%p328) target = $region36
        $region35: #{tpu_custom_call.1} parent=11 // pred_region
          _
        $region36: #{tpu_custom_call.1} parent=11 // pred_fallthru
          _
        // Predicated region
        $region37: #{tpu_custom_call.1} parent=11 // pred_check
          %p331 = pneg %p209
        $region38: #{tpu_custom_call.1} parent=11 // pred_check_branch
          %333 = sbr.rel (%p331) target = $region40
        $region39: #{tpu_custom_call.1} parent=11 // pred_region
          _
        $region40: #{tpu_custom_call.1} parent=11 // pred_fallthru
          _
        // Predicated region
        $region41: #{tpu_custom_call.1} parent=11 // pred_check
          %p334 = pneg %p230
        $region42: #{tpu_custom_call.1} parent=11 // pred_check_branch
          %336 = sbr.rel (%p334) target = $region44
        $region43: #{tpu_custom_call.1} parent=11 // pred_region
          _
        $region44: #{tpu_custom_call.1} parent=11 // pred_fallthru
          _
        // Predicated region
        $region45: #{tpu_custom_call.1} parent=11 // pred_check
          %p337 = pneg %p251
        $region46: #{tpu_custom_call.1} parent=11 // pred_check_branch
          %339 = sbr.rel (%p337) target = $region48
        $region47: #{tpu_custom_call.1} parent=11 // pred_region
          _
        $region48: #{tpu_custom_call.1} parent=11 // pred_fallthru
          _
        // Predicated region
        $region49: #{tpu_custom_call.1} parent=11 // pred_check
          %p340 = pneg %p272
        $region50: #{tpu_custom_call.1} parent=11 // pred_check_branch
          %342 = sbr.rel (%p340) target = $region52
        $region51: #{tpu_custom_call.1} parent=11 // pred_region
          _
        $region52: #{tpu_custom_call.1} parent=11 // pred_fallthru
          _
      $region12: #{tpu_custom_call.1} parent=5 // pred_fallthru
        _
      %p343 = scmp.lt.s32.totalorder %s22, 2
      // Predicated region
      $region53: #{tpu_custom_call.1} parent=5 // pred_check
        %p344 = pneg %p343
      $region54: #{tpu_custom_call.1} parent=5 // pred_check_branch
        %346 = sbr.rel (%p344) target = $region56
      $region55: #{tpu_custom_call.1} parent=5 // pred_region
        // Predicated region
        $region57: #{tpu_custom_call.1} parent=55 // pred_check
          %p347 = pneg %p56
        $region58: #{tpu_custom_call.1} parent=55 // pred_check_branch
          %349 = sbr.rel (%p347) target = $region60
        $region59: #{tpu_custom_call.1} parent=55 // pred_region
          %p350 = scmp.lt.s32.totalorder %s29, 1
          %s351 = scalar_select %p350, %s29, 1
          %p352 = scmp.lt.s32.totalorder %s30, 0
          %s353 = scalar_select %p352, %s30, 0
          %s354 = sadd.s32 %s353, %s351
          %s355 = smul.addr %s354, 2
          %s356 = scalar_lea.vmem %s0, %s355
        $region60: #{tpu_custom_call.1} parent=55 // pred_fallthru
          _
      $region56: #{tpu_custom_call.1} parent=5 // pred_fallthru
        _
      %p357 = scmp.le.s32.totalorder 1, %s22
      %p358 = scmp.lt.s32.totalorder %s22, 3
      %p359 = pnand %p357, %p358
      %p360 = pneg %p359
      // Predicated region
      $region61: #{tpu_custom_call.1} parent=5 // pred_check
        _
      $region62: #{tpu_custom_call.1} parent=5 // pred_check_branch
        %362 = sbr.rel (%p359) target = $region64
      $region63: #{tpu_custom_call.1} parent=5 // pred_region
        %s363 = ssub.s32 %s22, 1
        %p364 = scmp.lt.s32.totalorder %s31, 1
        %s365 = scalar_select %p364, %s31, 1
        %p366 = scmp.lt.s32.totalorder %s32, 0
        %s367 = scalar_select %p366, %s32, 0
        %s368 = sadd.s32 %s367, %s365
        %s369 = smul.addr %s368, 2
        %s370 = scalar_lea.vmem %s0, %s369
        %p371 = pneg %p62
        %p372 = pneg %p59
        %p373 = pneg %p83
        %p374 = pneg %p80
        %p375 = pneg %p104
        %p376 = pneg %p101
        %p377 = pneg %p125
        %p378 = pneg %p122
        %p379 = pneg %p146
        %p380 = pneg %p143
        %p381 = pneg %p167
        %p382 = pneg %p164
        %p383 = pneg %p188
        %p384 = pneg %p185
        %p385 = pneg %p209
        %p386 = pneg %p206
        %p387 = pneg %p230
        %p388 = pneg %p227
        %p389 = pneg %p251
        %p390 = pneg %p248
        %p391 = pneg %p272
        %p392 = pneg %p269
        %p393 = pneg %p298
        %p394 = pneg %p295
        %s395 = sand.u32 %s285, 1
        %s396 = scalar_lea.sflag [#allocation5], %s395
        %s397 = sand.u32 %s285, 1
        %s398 = scalar_lea.vmem [#allocation4], %s397
        %p399 = scmp.lt.s32.totalorder %s31, 1
        %s400 = scalar_select %p399, %s31, 1
        %p401 = scmp.lt.s32.totalorder %s32, 0
        %s402 = scalar_select %p401, %s32, 0
        %s403 = sadd.s32 %s402, %s400
        %s404 = smul.addr %s403, 2
        %s405 = scalar_lea.vmem %s0, %s404
        %p407 = scmp.eq.s32.totalorder %s32, 0
        // Predicated region
        $region65: #{tpu_custom_call.1} parent=63 // pred_check
          %p408 = pneg %p407
        $region66: #{tpu_custom_call.1} parent=63 // pred_check_branch
          %410 = sbr.rel (%p408) target = $region68
        $region67: #{tpu_custom_call.1} parent=63 // pred_region
          %vm411 = vcmask 7168
          %412 = vst.msk [vmem:[#allocation2] sm:$0xff] %vm411, 0.0
          %413 = vst.msk [vmem:[#allocation2 + $0x8] sm:$0xff] %vm411, 0.0
          %414 = vst.msk [vmem:[#allocation2 + $0x10] sm:$0xff] %vm411, 0.0
          %415 = vst.msk [vmem:[#allocation2 + $0x18] sm:$0xff] %vm411, 0.0
        $region68: #{tpu_custom_call.1} parent=63 // pred_fallthru
          _
        %v416 = vld [vmem:[%s405] sm:$0x3]
        %v417 = vld [vmem:[%s1] sm:$0xf]
        %v418 = vld [vmem:[%s1 + $0x4] sm:$0xf]
        %v419 = vld [vmem:[%s1 + $0x8] sm:$0xf]
        %v420 = vld [vmem:[%s1 + $0xc] sm:$0xf]
        %v421 = vld [vmem:[%s2] sm:$0xff]
        %v422 = vld [vmem:[%s2 + $0x8] sm:$0xff]
        %v423 = vld [vmem:[%s2 + $0x10] sm:$0xff]
        %v424 = vld [vmem:[%s2 + $0x18] sm:$0xff]
        %426 = vset.pattern.permute.xlu0 0
        %427 = vperm.xlu0 %426, %v421
        %v428 = vpop.permute.xlu0 %427
        %431 = vset.pattern.permute.xlu0 0
        %432 = vperm.xlu0 %431, %v422
        %v433 = vpop.permute.xlu0 %432
        %436 = vset.pattern.permute.xlu0 0
        %437 = vperm.xlu0 %436, %v423
        %v438 = vpop.permute.xlu0 %437
        %441 = vset.pattern.permute.xlu0 0
        %442 = vperm.xlu0 %441, %v424
        %v443 = vpop.permute.xlu0 %442
        %v449 = vunpack.c.l.b16 %v417
        %v450 = vunpack.c.l.b16 %v418
        %v451 = vunpack.c.l.b16 %v419
        %v452 = vunpack.c.l.b16 %v420
        %v453 = vpack.c.b16 %v450, %v449
        %v454 = vpack.c.b16 %v452, %v451
        %vm455 = vcmask 31744
        %v457 = vsel %vm455, %v453, 0
        %v460 = vsel %vm455, %v454, 0
        %vm462 = vcmask 1041408
        %v464 = vsel %vm462, %v416, 0
        %466 = vmatprep.subr.bf16.mxu0 0
        %467 = vmatpush1.bf16.msra.mxu0 %v464
        %468 = vmatprep.subr.bf16.mxu0 0
        %469 = vmatpush1.bf16.msra.mxu0 0
        %470 = vmatprep.subr.bf16.mxu0 0
        %471 = vmatpush1.bf16.msra.mxu0 0
        %472 = vmatprep.subr.bf16.mxu0 0
        %473 = vmatpush1.bf16.msra.mxu0 0
        %474 = vmatprep.subr.bf16.mxu0 0
        %475 = vmatpush1.bf16.msra.mxu0 0
        %476 = vmatprep.subr.bf16.mxu0 0
        %477 = vmatpush1.bf16.msra.mxu0 0
        %478 = vmatprep.subr.bf16.mxu0 0
        %479 = vmatpush1.bf16.msra.mxu0 0
        %480 = vmatprep.subr.bf16.mxu0 0
        %481 = vmatpush1.bf16.msra.mxu0 0
        %482 = vmatprep.subr.bf16.mxu0 0
        %483 = vmatpush1.bf16.msra.mxu0 0
        %484 = vmatprep.subr.bf16.mxu0 0
        %485 = vmatpush1.bf16.msra.mxu0 0
        %486 = vmatprep.subr.bf16.mxu0 0
        %487 = vmatpush1.bf16.msra.mxu0 0
        %488 = vmatprep.subr.bf16.mxu0 0
        %489 = vmatpush1.bf16.msra.mxu0 0
        %490 = vmatprep.subr.bf16.mxu0 0
        %491 = vmatpush1.bf16.msra.mxu0 0
        %492 = vmatprep.subr.bf16.mxu0 0
        %493 = vmatpush1.bf16.msra.mxu0 0
        %494 = vmatprep.subr.bf16.mxu0 0
        %495 = vmatpush1.bf16.msra.mxu0 0
        %496 = vmatprep.subr.bf16.mxu0 0
        %497 = vmatpush1.bf16.msra.mxu0 0
        %498 = vmatprep.mubr.bf16.mxu0 0
        %499 = vmatmul.mubr.bf16.gmra.mrb[0].mxu0 %v457
        %v500 = vpop.f32.mrb[0].mxu0
        %v501 = vadd.f32 %v428, %v500
        %v502 = vpop.f32.mrb[0].mxu0
        %v503 = vpop.f32.mrb[0].mxu0
        %v504 = vadd.f32 %v433, %v503
        %v505 = vpop.f32.mrb[0].mxu0
        %506 = vmatprep.mubr.bf16.mxu0 0
        %507 = vmatmul.mubr.bf16.gmra.mrb[0].mxu0 %v460
        %v508 = vpop.f32.mrb[0].mxu0
        %v509 = vadd.f32 %v438, %v508
        %v510 = vpop.f32.mrb[0].mxu0
        %v511 = vpop.f32.mrb[0].mxu0
        %v512 = vadd.f32 %v443, %v511
        %v513 = vpop.f32.mrb[0].mxu0
        %514 = vdwg.mxu0
        %v515 = vmax.f32 %v501, 0.0
        %v516 = vmax.f32 %v504, 0.0
        %v517 = vmax.f32 %v509, 0.0
        %v518 = vmax.f32 %v512, 0.0
        %v519 = vld [vmem:[%s3] sm:$0xf]
        %v520 = vld [vmem:[%s3 + $0x4] sm:$0xf]
        %v521 = vld [vmem:[%s3 + $0x8] sm:$0xf]
        %v522 = vld [vmem:[%s3 + $0xc] sm:$0xf]
        %v523 = vpack.c.bf16 %v516, %v515
        %v524 = vpack.c.bf16 %v518, %v517
        %v525 = vld [vmem:[%s4] sm:$0xff]
        %v526 = vld [vmem:[%s4 + $0x8] sm:$0xff]
        %v527 = vld [vmem:[%s4 + $0x10] sm:$0xff]
        %v528 = vld [vmem:[%s4 + $0x18] sm:$0xff]
        %530 = vset.pattern.permute.xlu0 0
        %531 = vperm.xlu0 %530, %v525
        %v532 = vpop.permute.xlu0 %531
        %535 = vset.pattern.permute.xlu0 0
        %536 = vperm.xlu0 %535, %v526
        %v537 = vpop.permute.xlu0 %536
        %540 = vset.pattern.permute.xlu0 0
        %541 = vperm.xlu0 %540, %v527
        %v542 = vpop.permute.xlu0 %541
        %545 = vset.pattern.permute.xlu0 0
        %546 = vperm.xlu0 %545, %v528
        %v547 = vpop.permute.xlu0 %546
        %v553 = vunpack.c.l.b16 %v519
        %v554 = vunpack.c.l.b16 %v520
        %v555 = vunpack.c.l.b16 %v521
        %v556 = vunpack.c.l.b16 %v522
        %v557 = vpack.c.b16 %v554, %v553
        %v558 = vpack.c.b16 %v556, %v555
        %vm559 = vcmask 261120
        %v561 = vsel %vm559, %v557, 0
        %v564 = vsel %vm559, %v558, 0
        %566 = vmatprep.subr.bf16.mxu0 0
        %567 = vmatpush1.bf16.msra.mxu0 %v523
        %568 = vmatprep.subr.bf16.mxu0 0
        %569 = vmatpush1.bf16.msra.mxu0 %v524
        %570 = vmatprep.subr.bf16.mxu0 0
        %571 = vmatpush1.bf16.msra.mxu0 0
        %572 = vmatprep.subr.bf16.mxu0 0
        %573 = vmatpush1.bf16.msra.mxu0 0
        %574 = vmatprep.subr.bf16.mxu0 0
        %575 = vmatpush1.bf16.msra.mxu0 0
        %576 = vmatprep.subr.bf16.mxu0 0
        %577 = vmatpush1.bf16.msra.mxu0 0
        %578 = vmatprep.subr.bf16.mxu0 0
        %579 = vmatpush1.bf16.msra.mxu0 0
        %580 = vmatprep.subr.bf16.mxu0 0
        %581 = vmatpush1.bf16.msra.mxu0 0
        %582 = vmatprep.subr.bf16.mxu0 0
        %583 = vmatpush1.bf16.msra.mxu0 0
        %584 = vmatprep.subr.bf16.mxu0 0
        %585 = vmatpush1.bf16.msra.mxu0 0
        %586 = vmatprep.subr.bf16.mxu0 0
        %587 = vmatpush1.bf16.msra.mxu0 0
        %588 = vmatprep.subr.bf16.mxu0 0
        %589 = vmatpush1.bf16.msra.mxu0 0
        %590 = vmatprep.subr.bf16.mxu0 0
        %591 = vmatpush1.bf16.msra.mxu0 0
        %592 = vmatprep.subr.bf16.mxu0 0
        %593 = vmatpush1.bf16.msra.mxu0 0
        %594 = vmatprep.subr.bf16.mxu0 0
        %595 = vmatpush1.bf16.msra.mxu0 0
        %596 = vmatprep.subr.bf16.mxu0 0
        %597 = vmatpush1.bf16.msra.mxu0 0
        %598 = vmatprep.mubr.bf16.mxu0 0
        %599 = vmatmul.mubr.bf16.gmra.mrb[0].mxu0 %v561
        %v600 = vpop.f32.mrb[0].mxu0
        %v601 = vadd.f32 %v532, %v600
        %v602 = vpop.f32.mrb[0].mxu0
        %v603 = vpop.f32.mrb[0].mxu0
        %v604 = vadd.f32 %v537, %v603
        %v605 = vpop.f32.mrb[0].mxu0
        %606 = vmatprep.mubr.bf16.mxu0 0
        %607 = vmatmul.mubr.bf16.gmra.mrb[0].mxu0 %v564
        %v608 = vpop.f32.mrb[0].mxu0
        %v609 = vadd.f32 %v542, %v608
        %v610 = vpop.f32.mrb[0].mxu0
        %v611 = vpop.f32.mrb[0].mxu0
        %v612 = vadd.f32 %v547, %v611
        %v613 = vpop.f32.mrb[0].mxu0
        %614 = vdwg.mxu0
        %v615 = vmax.f32 %v601, 0.0
        %v616 = vmax.f32 %v604, 0.0
        %v617 = vmax.f32 %v609, 0.0
        %v618 = vmax.f32 %v612, 0.0
        %v619 = vld [vmem:[%s5] sm:$0xf]
        %v620 = vld [vmem:[%s5 + $0x4] sm:$0xf]
        %v621 = vld [vmem:[%s5 + $0x8] sm:$0xf]
        %v622 = vld [vmem:[%s5 + $0xc] sm:$0xf]
        %v623 = vpack.c.bf16 %v616, %v615
        %v624 = vpack.c.bf16 %v618, %v617
        %v625 = vld [vmem:[%s6] sm:$0xff]
        %v626 = vld [vmem:[%s6 + $0x8] sm:$0xff]
        %v627 = vld [vmem:[%s6 + $0x10] sm:$0xff]
        %v628 = vld [vmem:[%s6 + $0x18] sm:$0xff]
        %630 = vset.pattern.permute.xlu0 0
        %631 = vperm.xlu0 %630, %v625
        %v632 = vpop.permute.xlu0 %631
        %635 = vset.pattern.permute.xlu0 0
        %636 = vperm.xlu0 %635, %v626
        %v637 = vpop.permute.xlu0 %636
        %640 = vset.pattern.permute.xlu0 0
        %641 = vperm.xlu0 %640, %v627
        %v642 = vpop.permute.xlu0 %641
        %645 = vset.pattern.permute.xlu0 0
        %646 = vperm.xlu0 %645, %v628
        %v647 = vpop.permute.xlu0 %646
        %v653 = vunpack.c.l.b16 %v619
        %v654 = vunpack.c.l.b16 %v620
        %v655 = vunpack.c.l.b16 %v621
        %v656 = vunpack.c.l.b16 %v622
        %v657 = vpack.c.b16 %v654, %v653
        %v658 = vpack.c.b16 %v656, %v655
        %v660 = vsel %vm559, %v657, 0
        %v663 = vsel %vm559, %v658, 0
        %665 = vmatprep.subr.bf16.mxu0 0
        %666 = vmatpush1.bf16.msra.mxu0 %v623
        %667 = vmatprep.subr.bf16.mxu0 0
        %668 = vmatpush1.bf16.msra.mxu0 %v624
        %669 = vmatprep.subr.bf16.mxu0 0
        %670 = vmatpush1.bf16.msra.mxu0 0
        %671 = vmatprep.subr.bf16.mxu0 0
        %672 = vmatpush1.bf16.msra.mxu0 0
        %673 = vmatprep.subr.bf16.mxu0 0
        %674 = vmatpush1.bf16.msra.mxu0 0
        %675 = vmatprep.subr.bf16.mxu0 0
        %676 = vmatpush1.bf16.msra.mxu0 0
        %677 = vmatprep.subr.bf16.mxu0 0
        %678 = vmatpush1.bf16.msra.mxu0 0
        %679 = vmatprep.subr.bf16.mxu0 0
        %680 = vmatpush1.bf16.msra.mxu0 0
        %681 = vmatprep.subr.bf16.mxu0 0
        %682 = vmatpush1.bf16.msra.mxu0 0
        %683 = vmatprep.subr.bf16.mxu0 0
        %684 = vmatpush1.bf16.msra.mxu0 0
        %685 = vmatprep.subr.bf16.mxu0 0
        %686 = vmatpush1.bf16.msra.mxu0 0
        %687 = vmatprep.subr.bf16.mxu0 0
        %688 = vmatpush1.bf16.msra.mxu0 0
        %689 = vmatprep.subr.bf16.mxu0 0
        %690 = vmatpush1.bf16.msra.mxu0 0
        %691 = vmatprep.subr.bf16.mxu0 0
        %692 = vmatpush1.bf16.msra.mxu0 0
        %693 = vmatprep.subr.bf16.mxu0 0
        %694 = vmatpush1.bf16.msra.mxu0 0
        %695 = vmatprep.subr.bf16.mxu0 0
        %696 = vmatpush1.bf16.msra.mxu0 0
        %697 = vmatprep.mubr.bf16.mxu0 0
        %698 = vmatmul.mubr.bf16.gmra.mrb[0].mxu0 %v660
        %v699 = vpop.f32.mrb[0].mxu0
        %v700 = vadd.f32 %v632, %v699
        %v701 = vpop.f32.mrb[0].mxu0
        %v702 = vpop.f32.mrb[0].mxu0
        %v703 = vadd.f32 %v637, %v702
        %v704 = vpop.f32.mrb[0].mxu0
        %705 = vmatprep.mubr.bf16.mxu0 0
        %706 = vmatmul.mubr.bf16.gmra.mrb[0].mxu0 %v663
        %v707 = vpop.f32.mrb[0].mxu0
        %v708 = vadd.f32 %v642, %v707
        %v709 = vpop.f32.mrb[0].mxu0
        %v710 = vpop.f32.mrb[0].mxu0
        %v711 = vadd.f32 %v647, %v710
        %v712 = vpop.f32.mrb[0].mxu0
        %713 = vdwg.mxu0
        %v714 = vmax.f32 %v700, 0.0
        %v715 = vmax.f32 %v703, 0.0
        %v716 = vmax.f32 %v708, 0.0
        %v717 = vmax.f32 %v711, 0.0
        %v718 = vlaneseq
        %v719 = vand.u32 %v718, 127
        %s720 = smul.u32 %s32, 128
        %v721 = vstv %s720
        %v722 = vadd.s32 %v719, %v721
        %vm723 = vcmp.lt.s32.totalorder %v722, 16
        %v724 = vsel %vm723, 1, 0
        %vm725 = vcmp.eq.s32.totalorder %v724, 1
        %v726 = vsel %vm725, %v714, 0.0
        %v727 = vsel %vm725, %v715, 0.0
        %v728 = vsel %vm725, %v716, 0.0
        %v729 = vsel %vm725, %v717, 0.0
        %v730 = vld [vmem:[#allocation2] sm:$0xff]
        %v731 = vld [vmem:[#allocation2 + $0x8] sm:$0xff]
        %v732 = vld [vmem:[#allocation2 + $0x10] sm:$0xff]
        %v733 = vld [vmem:[#allocation2 + $0x18] sm:$0xff]
        %734 = vadd.xlane.f32.xlu0 %v726
        %v735 = vpop.xlane.xlu0 %734
        %736 = vadd.xlane.f32.xlu0 %v727
        %v737 = vpop.xlane.xlu0 %736
        %738 = vadd.xlane.f32.xlu0 %v728
        %v739 = vpop.xlane.xlu0 %738
        %740 = vadd.xlane.f32.xlu0 %v729
        %v741 = vpop.xlane.xlu0 %740
        %v742 = vadd.f32 %v730, %v735
        %v743 = vadd.f32 %v731, %v737
        %v744 = vadd.f32 %v732, %v739
        %v745 = vadd.f32 %v733, %v741
        %vm746 = vcmask 7168
        %747 = vst.msk [vmem:[#allocation2] sm:$0xff] %vm746, %v742
        %748 = vst.msk [vmem:[#allocation2 + $0x8] sm:$0xff] %vm746, %v743
        %749 = vst.msk [vmem:[#allocation2 + $0x10] sm:$0xff] %vm746, %v744
        %750 = vst.msk [vmem:[#allocation2 + $0x18] sm:$0xff] %vm746, %v745
        // Predicated region
        $region69: #{tpu_custom_call.1} parent=63 // pred_check
          %p751 = pneg %p407
        $region70: #{tpu_custom_call.1} parent=63 // pred_check_branch
          %753 = sbr.rel (%p751) target = $region72
        $region71: #{tpu_custom_call.1} parent=63 // pred_region
          %v754 = vld [vmem:[#allocation2] sm:$0xff]
          %v755 = vld [vmem:[#allocation2 + $0x8] sm:$0xff]
          %v756 = vld [vmem:[#allocation2 + $0x10] sm:$0xff]
          %v757 = vld [vmem:[#allocation2 + $0x18] sm:$0xff]
          %v758 = vmul.f32 %v754, 0.0625
          %v759 = vmul.f32 %v755, 0.0625
          %v760 = vmul.f32 %v756, 0.0625
          %v761 = vmul.f32 %v757, 0.0625
          %v762 = vld [vmem:[%s7] sm:$0xf]
          %v763 = vld [vmem:[%s7 + $0x4] sm:$0xf]
          %v764 = vld [vmem:[%s7 + $0x8] sm:$0xf]
          %v765 = vld [vmem:[%s7 + $0xc] sm:$0xf]
          %v766 = vpack.c.bf16 %v759, %v758
          %v767 = vpack.c.bf16 %v761, %v760
          %v768 = vld [vmem:[%s8] sm:$0xff]
          %v769 = vld [vmem:[%s8 + $0x8] sm:$0xff]
          %v770 = vld [vmem:[%s8 + $0x10] sm:$0xff]
          %v771 = vld [vmem:[%s8 + $0x18] sm:$0xff]
          %v776 = vunpack.c.l.b16 %v762
          %v777 = vunpack.c.l.b16 %v763
          %v778 = vunpack.c.l.b16 %v764
          %v779 = vunpack.c.l.b16 %v765
          %v780 = vpack.c.b16 %v777, %v776
          %v781 = vpack.c.b16 %v779, %v778
          %v783 = vsel %vm559, %v780, 0
          %v786 = vsel %vm559, %v781, 0
          %788 = vmatprep.subr.bf16.mxu0 0
          %789 = vmatpush1.bf16.msra.mxu0 %v766
          %790 = vmatprep.subr.bf16.mxu0 0
          %791 = vmatpush1.bf16.msra.mxu0 %v767
          %792 = vmatprep.subr.bf16.mxu0 0
          %793 = vmatpush1.bf16.msra.mxu0 0
          %794 = vmatprep.subr.bf16.mxu0 0
          %795 = vmatpush1.bf16.msra.mxu0 0
          %796 = vmatprep.subr.bf16.mxu0 0
          %797 = vmatpush1.bf16.msra.mxu0 0
          %798 = vmatprep.subr.bf16.mxu0 0
          %799 = vmatpush1.bf16.msra.mxu0 0
          %800 = vmatprep.subr.bf16.mxu0 0
          %801 = vmatpush1.bf16.msra.mxu0 0
          %802 = vmatprep.subr.bf16.mxu0 0
          %803 = vmatpush1.bf16.msra.mxu0 0
          %804 = vmatprep.subr.bf16.mxu0 0
          %805 = vmatpush1.bf16.msra.mxu0 0
          %806 = vmatprep.subr.bf16.mxu0 0
          %807 = vmatpush1.bf16.msra.mxu0 0
          %808 = vmatprep.subr.bf16.mxu0 0
          %809 = vmatpush1.bf16.msra.mxu0 0
          %810 = vmatprep.subr.bf16.mxu0 0
          %811 = vmatpush1.bf16.msra.mxu0 0
          %812 = vmatprep.subr.bf16.mxu0 0
          %813 = vmatpush1.bf16.msra.mxu0 0
          %814 = vmatprep.subr.bf16.mxu0 0
          %815 = vmatpush1.bf16.msra.mxu0 0
          %816 = vmatprep.subr.bf16.mxu0 0
          %817 = vmatpush1.bf16.msra.mxu0 0
          %818 = vmatprep.subr.bf16.mxu0 0
          %819 = vmatpush1.bf16.msra.mxu0 0
          %820 = vmatprep.mubr.bf16.mxu0 0
          %821 = vmatmul.mubr.bf16.gmra.mrb[0].mxu0 %v783
          %v822 = vpop.f32.mrb[0].mxu0
          %v823 = vadd.f32 %v768, %v822
          %v824 = vpop.f32.mrb[0].mxu0
          %v825 = vpop.f32.mrb[0].mxu0
          %v826 = vadd.f32 %v769, %v825
          %v827 = vpop.f32.mrb[0].mxu0
          %828 = vmatprep.mubr.bf16.mxu0 0
          %829 = vmatmul.mubr.bf16.gmra.mrb[0].mxu0 %v786
          %v830 = vpop.f32.mrb[0].mxu0
          %v831 = vadd.f32 %v770, %v830
          %v832 = vpop.f32.mrb[0].mxu0
          %v833 = vpop.f32.mrb[0].mxu0
          %v834 = vadd.f32 %v771, %v833
          %v835 = vpop.f32.mrb[0].mxu0
          %836 = vdwg.mxu0
          %v837 = vmax.f32 %v823, 0.0
          %v838 = vmax.f32 %v826, 0.0
          %v839 = vmax.f32 %v831, 0.0
          %v840 = vmax.f32 %v834, 0.0
          %v841 = vld [vmem:[%s9] sm:$0x1]
          %v842 = vpack.c.bf16 %v838, %v837
          %v843 = vpack.c.bf16 %v840, %v839
          %v844 = vld [vmem:[#allocation3] sm:$0x1]
          %v846 = vsel %vm559, %v841, 0
          %848 = vmatprep.subr.bf16.mxu0 0
          %849 = vmatpush1.bf16.msra.mxu0 %v842
          %850 = vmatprep.subr.bf16.mxu0 0
          %851 = vmatpush1.bf16.msra.mxu0 %v843
          %852 = vmatprep.subr.bf16.mxu0 0
          %853 = vmatpush1.bf16.msra.mxu0 0
          %854 = vmatprep.subr.bf16.mxu0 0
          %855 = vmatpush1.bf16.msra.mxu0 0
          %856 = vmatprep.subr.bf16.mxu0 0
          %857 = vmatpush1.bf16.msra.mxu0 0
          %858 = vmatprep.subr.bf16.mxu0 0
          %859 = vmatpush1.bf16.msra.mxu0 0
          %860 = vmatprep.subr.bf16.mxu0 0
          %861 = vmatpush1.bf16.msra.mxu0 0
          %862 = vmatprep.subr.bf16.mxu0 0
          %863 = vmatpush1.bf16.msra.mxu0 0
          %864 = vmatprep.subr.bf16.mxu0 0
          %865 = vmatpush1.bf16.msra.mxu0 0
          %866 = vmatprep.subr.bf16.mxu0 0
          %867 = vmatpush1.bf16.msra.mxu0 0
          %868 = vmatprep.subr.bf16.mxu0 0
          %869 = vmatpush1.bf16.msra.mxu0 0
          %870 = vmatprep.subr.bf16.mxu0 0
          %871 = vmatpush1.bf16.msra.mxu0 0
          %872 = vmatprep.subr.bf16.mxu0 0
          %873 = vmatpush1.bf16.msra.mxu0 0
          %874 = vmatprep.subr.bf16.mxu0 0
          %875 = vmatpush1.bf16.msra.mxu0 0
          %876 = vmatprep.subr.bf16.mxu0 0
          %877 = vmatpush1.bf16.msra.mxu0 0
          %878 = vmatprep.subr.bf16.mxu0 0
          %879 = vmatpush1.bf16.msra.mxu0 0
          %880 = vmatprep.mubr.bf16.mxu0 0
          %881 = vmatmul.mubr.bf16.gmra.mrb[0].mxu0 %v846
          %v882 = vpop.f32.mrb[0].mxu0
          %v883 = vadd.f32 %v844, %v882
          %v884 = vpop.f32.mrb[0].mxu0
          %v885 = vpop.f32.mrb[0].mxu0
          %v886 = vpop.f32.mrb[0].mxu0
          %887 = vdwg.mxu0
          %v888 = vxor.u32 %v883, 2147483648
          %v889 = vmul.f32 %v888, 1.442695
          %v890 = vpow.pop %v889
          %v891 = vadd.f32 %v890, 1.0
          %v892 = vrcp.pop %v891
          %v893 = vmul.f32 1.0, %v892
          %895 = vset.pattern.permute.xlu0 0
          %896 = vperm.xlu0 %895, %v893
          %v897 = vpop.permute.xlu0 %896
          %899 = vst [vmem:[%s398] sm:$0x1] %v897
        $region72: #{tpu_custom_call.1} parent=63 // pred_fallthru
          _
        %s900 = sand.u32 %s285, 1
        %s901 = scalar_lea.sflag [#allocation5], %s900
        %s902 = sand.u32 %s285, 1
        %s903 = scalar_lea.vmem [#allocation4], %s902
        // Predicated region
        $region73: #{tpu_custom_call.1} parent=63 // pred_check
          %p904 = pneg %p295
        $region74: #{tpu_custom_call.1} parent=63 // pred_check_branch
          %906 = sbr.rel (%p904) target = $region76
        $region75: #{tpu_custom_call.1} parent=63 // pred_region
          %s908 = ssub.s32 16, 16
          %909 = vsyncadd %s901, %s908
          %s910 = smul.addr %s31, 16
          %s911 = scalar_lea.hbm %s11, %s910
          %s913 = sshll.u32 %s903, 4
          %s914 = int_to_ptr.vmem [resolvable:$true] %s913
          %916 = dma.vmem_to_hbm [thread:$0]  %s914, 16, %s911, %s901
        $region76: #{tpu_custom_call.1} parent=63 // pred_fallthru
          _
      $region64: #{tpu_custom_call.1} parent=5 // pred_fallthru
        _
      %p917 = scmp.le.s32.totalorder 2, %s22
      // Predicated region
      $region77: #{tpu_custom_call.1} parent=5 // pred_check
        %p918 = pneg %p917
      $region78: #{tpu_custom_call.1} parent=5 // pred_check_branch
        %920 = sbr.rel (%p918) target = $region80
      $region79: #{tpu_custom_call.1} parent=5 // pred_region
        %s921 = ssub.s32 %s22, 2
        // Predicated region
        $region81: #{tpu_custom_call.1} parent=79 // pred_check
          %p922 = pneg %p301
        $region82: #{tpu_custom_call.1} parent=79 // pred_check_branch
          %924 = sbr.rel (%p922) target = $region84
        $region83: #{tpu_custom_call.1} parent=79 // pred_region
          %s925 = sand.u32 %s286, 1
          %s926 = scalar_lea.sflag [#allocation5], %s925
          %s927 = sand.u32 %s286, 1
          %s928 = scalar_lea.vmem [#allocation4], %s927
          %929 = dma.done %s926, 16
        $region84: #{tpu_custom_call.1} parent=79 // pred_fallthru
          _
      $region80: #{tpu_custom_call.1} parent=5 // pred_fallthru
        _
    $region6: #{tpu_custom_call.1} parent=1 // loop_footer
      %s26 = sadd.s32 1, %s22
    $region7: #{tpu_custom_call.1} parent=1 // loop_footer_branch
      %21 = sbr.rel target = $region3
    $region8: #{tpu_custom_call.1} parent=1 // loop_exit
      _
    %930 = vsyncpa [#allocation5], 1
    %s931 = scalar_lea.sflag [#allocation5], 1
    %932 = vsyncpa %s931, 1

</llo_original>
